<compile_context>
chip_gen: v6e
topology: v6e:2x2x1
jax: 0.10.0
libtpu: 0.0.40
codegen_flags: <defaults>
</compile_context>

<pallas_src>
import functools

import jax
import jax.numpy as jnp
from jax.experimental import pallas as pl
from jax.experimental.pallas import tpu as pltpu


def _ce_label_smooth_kernel(x_ref, t_ref, o_ref, *, num_classes, epsilon, total_n):
    i = pl.program_id(0)

    @pl.when(i == 0)
    def _init():
        o_ref[...] = jnp.zeros_like(o_ref)

    x = x_ref[...].astype(jnp.float32)            # (T, C)
    t = t_ref[...]                                # (T, 1) int32
    tile_rows = x.shape[0]

    # Numerically stable log-softmax pieces (per row).
    m = jnp.max(x, axis=1, keepdims=True)                                   # (T, 1)
    shifted = x - m                                                         # (T, C)
    lse = jnp.log(jnp.sum(jnp.exp(shifted), axis=1, keepdims=True))         # (T, 1)

    # Gather shifted[n, t_n] without a cross-lane gather: iota compare + sum.
    col = jax.lax.broadcasted_iota(jnp.int32, x.shape, 1)                   # (T, C)
    tgt_shifted = jnp.sum(jnp.where(col == t, shifted, 0.0),
                          axis=1, keepdims=True)                            # (T, 1)
    row_sum_shifted = jnp.sum(shifted, axis=1, keepdims=True)               # (T, 1)

    # loss_n = lse_n - (1-eps)*shifted[n,t_n] - (eps/C)*sum_c shifted[n,c]
    per_row = (lse
               - jnp.float32(1.0 - epsilon) * tgt_shifted
               - jnp.float32(epsilon / num_classes) * row_sum_shifted)      # (T, 1)

    # Mask padded rows of a ragged last tile (divide by the TOTAL N below).
    row = jax.lax.broadcasted_iota(jnp.int32, (tile_rows, 1), 0) + i * tile_rows
    per_row = jnp.where(row < total_n, per_row, 0.0)

    o_ref[...] += jnp.sum(per_row, axis=0, keepdims=True)                   # (1, 1)

    @pl.when(i == pl.num_programs(0) - 1)
    def _finalize():
        o_ref[...] = o_ref[...] * jnp.float32(1.0 / total_n)


def _sublane_multiple(itemsize):
    # f32 -> 8, bf16 -> 16, int8/fp8 -> 32 sublane packing.
    return max(8, 32 // max(itemsize, 1))


def cross_entropy_label_smooth(inputs, targets, num_classes, epsilon,
                               *, tile_n=None,
                               vmem_budget_bytes=12 * 1024 * 1024):
    """inputs: (N, C) float logits (f32 or bf16); targets: (N,) int class ids."""
    n, c = inputs.shape
    assert c == num_classes
    targets2d = targets.astype(jnp.int32).reshape(n, 1)

    itemsize = jnp.dtype(inputs.dtype).itemsize
    mult = _sublane_multiple(itemsize)

    if tile_n is None:
        # Largest row tile whose double-buffered input fits the VMEM budget.
        per_row_bytes = 2 * c * itemsize
        t = max(mult, min(int(vmem_budget_bytes // max(per_row_bytes, 1)), 1024))
        t = (t // mult) * mult
        n_up = ((n + mult - 1) // mult) * mult
        tile_n = max(mult, min(t, n_up))
    else:
        tile_n = max(mult, (int(tile_n) // mult) * mult)

    grid_n = pl.cdiv(n, tile_n)

    kernel = functools.partial(
        _ce_label_smooth_kernel,
        num_classes=num_classes, epsilon=float(epsilon), total_n=n,
    )

    out = pl.pallas_call(
        kernel,
        out_shape=jax.ShapeDtypeStruct((1, 1), jnp.float32),
        grid=(grid_n,),
        in_specs=[
            pl.BlockSpec((tile_n, c), lambda i: (i, 0)),
            pl.BlockSpec((tile_n, 1), lambda i: (i, 0)),
        ],
        out_specs=pl.BlockSpec((1, 1), lambda i: (0, 0)),
        compiler_params=pltpu.CompilerParams(
            dimension_semantics=("arbitrary",),
            vmem_limit_bytes=32 * 1024 * 1024,
        ),
    )(inputs, targets2d)
    return out[0, 0]


def _reference(inputs, targets, num_classes, epsilon):
    log_probs = jax.nn.log_softmax(inputs.astype(jnp.float32), axis=1)
    onehot = jax.nn.one_hot(targets, num_classes, dtype=jnp.float32)
    smoothed = (1.0 - epsilon) * onehot + epsilon / num_classes
    return (-smoothed * log_probs).mean(0).sum()


if __name__ == "__main__":
    epsilon = 0.1
    key = jax.random.PRNGKey(0)

    # Case 1: small, single tile (matches the module's toy usage).
    num_classes = 128
    batch = 8
    k1, k2, key = jax.random.split(key, 3)
    logits = jax.random.normal(k1, (batch, num_classes), dtype=jnp.float32)
    labels = jax.random.randint(k2, (batch,), 0, num_classes, dtype=jnp.int32)
    loss = jax.block_until_ready(
        cross_entropy_label_smooth(logits, labels, num_classes, epsilon))
    ref = _reference(logits, labels, num_classes, epsilon)
    assert jnp.allclose(loss, ref, atol=1e-5, rtol=1e-5), (loss, ref)

    # Case 2: multi-tile grid with a ragged last tile (exercises masking +
    # cross-step accumulation).
    num_classes = 512
    batch = 300
    k1, k2, key = jax.random.split(key, 3)
    logits = jax.random.normal(k1, (batch, num_classes), dtype=jnp.float32)
    labels = jax.random.randint(k2, (batch,), 0, num_classes, dtype=jnp.int32)
    loss = jax.block_until_ready(
        cross_entropy_label_smooth(logits, labels, num_classes, epsilon,
                                   tile_n=128))
    ref = _reference(logits, labels, num_classes, epsilon)
    assert jnp.allclose(loss, ref, atol=1e-5, rtol=1e-5), (loss, ref)

    # Case 3: bf16 logits (halves HBM traffic; math still done in f32).
    num_classes = 256
    batch = 64
    k1, k2, key = jax.random.split(key, 3)
    logits = jax.random.normal(k1, (batch, num_classes), dtype=jnp.bfloat16)
    labels = jax.random.randint(k2, (batch,), 0, num_classes, dtype=jnp.int32)
    loss = jax.block_until_ready(
        cross_entropy_label_smooth(logits, labels, num_classes, epsilon))
    ref = _reference(logits, labels, num_classes, epsilon)
    assert jnp.allclose(loss, ref, atol=1e-4, rtol=1e-4), (loss, ref)

    print("KERNEL_OK")
</pallas_src>

<mosaic_0001>
module attributes {stable_mosaic.version = 11 : i64} {
  func.func @_ce_label_smooth_kernel(%arg0: i32, %arg1: memref<8x128xf32, #tpu.memory_space<vmem>>, %arg2: memref<8x1xi32, #tpu.memory_space<vmem>>, %arg3: memref<1x1xf32, #tpu.memory_space<vmem>>) attributes {dimension_semantics = [#tpu.dimension_semantics<arbitrary>], iteration_bounds = array<i64: 1>, scalar_prefetch = 0 : i64, scratch_operands = 0 : i64, tpu.core_type = #tpu.core_type<tc>, window_params = [{transform_indices = @transform_0, window_bounds = array<i64: 8, 128>}, {transform_indices = @transform_1, window_bounds = array<i64: 8, 1>}, {pipeline_mode = #tpu.pipeline_mode<synchronous>, transform_indices = @transform_2, window_bounds = array<i64: 1, 1>}]} {
    %c0_i32 = arith.constant 0 : i32
    %0 = arith.cmpi eq, %arg0, %c0_i32 : i32
    %1 = arith.extui %0 : i1 to i32
    %c0_i32_0 = arith.constant 0 : i32
    %2 = arith.cmpi ne, %1, %c0_i32_0 : i32
    scf.if %2 {
      %cst_19 = arith.constant 0.000000e+00 : f32
      %44 = vector.broadcast %cst_19 : f32 to vector<1x1xf32>
      %c0_20 = arith.constant 0 : index
      %c0_21 = arith.constant 0 : index
      %45 = vector.load %arg3[%c0_20, %c0_21] : memref<1x1xf32, #tpu.memory_space<vmem>>, vector<1x1xf32>
      tpu.vector_store %arg3[%c0_20, %c0_21], %44 {strides = array<i32>} : memref<1x1xf32, #tpu.memory_space<vmem>>, vector<1x1xf32>,
    } else {
    }
    %c0 = arith.constant 0 : index
    %c0_1 = arith.constant 0 : index
    %3 = vector.load %arg1[%c0, %c0_1] : memref<8x128xf32, #tpu.memory_space<vmem>>, vector<8x128xf32>
    %c0_2 = arith.constant 0 : index
    %c0_3 = arith.constant 0 : index
    %4 = vector.load %arg2[%c0_2, %c0_3] : memref<8x1xi32, #tpu.memory_space<vmem>>, vector<8x1xi32>
    %cst = arith.constant dense<0xFF800000> : vector<8xf32>
    %5 = vector.multi_reduction <maximumf>, %3, %cst [1] : vector<8x128xf32> to vector<8xf32>
    %6 = vector.shape_cast %5 : vector<8xf32> to vector<8x1xf32>
    %7 = vector.broadcast %6 : vector<8x1xf32> to vector<8x128xf32>
    %8 = arith.subf %3, %7 : vector<8x128xf32>
    %9 = math.exp %8 : vector<8x128xf32>
    %cst_4 = arith.constant dense<0.000000e+00> : vector<8xf32>
    %10 = vector.multi_reduction <add>, %9, %cst_4 [1] : vector<8x128xf32> to vector<8xf32>
    %11 = vector.shape_cast %10 : vector<8xf32> to vector<8x1xf32>
    %12 = math.log %11 : vector<8x1xf32>
    %13 = tpu.iota {dimensions = array<i32: 1>} : vector<8x128xi32>
    %14 = vector.broadcast %4 : vector<8x1xi32> to vector<8x128xi32>
    %15 = arith.cmpi eq, %13, %14 : vector<8x128xi32>
    %cst_5 = arith.constant 0.000000e+00 : f32
    %16 = vector.broadcast %cst_5 : f32 to vector<8x128xf32>
    %17 = arith.select %15, %8, %16 : vector<8x128xi1>, vector<8x128xf32>
    %cst_6 = arith.constant dense<0.000000e+00> : vector<8xf32>
    %18 = vector.multi_reduction <add>, %17, %cst_6 [1] : vector<8x128xf32> to vector<8xf32>
    %19 = vector.shape_cast %18 : vector<8xf32> to vector<8x1xf32>
    %cst_7 = arith.constant dense<0.000000e+00> : vector<8xf32>
    %20 = vector.multi_reduction <add>, %8, %cst_7 [1] : vector<8x128xf32> to vector<8xf32>
    %21 = vector.shape_cast %20 : vector<8xf32> to vector<8x1xf32>
    %cst_8 = arith.constant 0.899999976 : f32
    %22 = vector.broadcast %cst_8 : f32 to vector<8x1xf32>
    %23 = arith.mulf %22, %19 : vector<8x1xf32>
    %24 = arith.subf %12, %23 : vector<8x1xf32>
    %cst_9 = arith.constant 7.812500e-04 : f32
    %25 = vector.broadcast %cst_9 : f32 to vector<8x1xf32>
    %26 = arith.mulf %25, %21 : vector<8x1xf32>
    %27 = arith.subf %24, %26 : vector<8x1xf32>
    %28 = tpu.iota {dimensions = array<i32: 0>} : vector<8x1xi32>
    %c8_i32 = arith.constant 8 : i32
    %29 = arith.muli %arg0, %c8_i32 : i32
    %30 = vector.broadcast %29 : i32 to vector<8x1xi32>
    %31 = arith.addi %28, %30 : vector<8x1xi32>
    %c8_i32_10 = arith.constant 8 : i32
    %32 = vector.broadcast %c8_i32_10 : i32 to vector<8x1xi32>
    %33 = arith.cmpi slt, %31, %32 : vector<8x1xi32>
    %cst_11 = arith.constant 0.000000e+00 : f32
    %34 = vector.broadcast %cst_11 : f32 to vector<8x1xf32>
    %35 = arith.select %33, %27, %34 : vector<8x1xi1>, vector<8x1xf32>
    %c0_12 = arith.constant 0 : index
    %c0_13 = arith.constant 0 : index
    %36 = vector.load %arg3[%c0_12, %c0_13] : memref<1x1xf32, #tpu.memory_space<vmem>>, vector<1x1xf32>
    %cst_14 = arith.constant dense<0.000000e+00> : vector<1xf32>
    %37 = vector.multi_reduction <add>, %35, %cst_14 [0] : vector<8x1xf32> to vector<1xf32>
    %38 = vector.shape_cast %37 : vector<1xf32> to vector<1x1xf32>
    %39 = arith.addf %36, %38 : vector<1x1xf32>
    %c0_15 = arith.constant 0 : index
    %c0_16 = arith.constant 0 : index
    %40 = vector.load %arg3[%c0_15, %c0_16] : memref<1x1xf32, #tpu.memory_space<vmem>>, vector<1x1xf32>
    tpu.vector_store %arg3[%c0_15, %c0_16], %39 {strides = array<i32>} : memref<1x1xf32, #tpu.memory_space<vmem>>, vector<1x1xf32>,
    %c0_i32_17 = arith.constant 0 : i32
    %41 = arith.cmpi eq, %arg0, %c0_i32_17 : i32
    %42 = arith.extui %41 : i1 to i32
    %c0_i32_18 = arith.constant 0 : i32
    %43 = arith.cmpi ne, %42, %c0_i32_18 : i32
    scf.if %43 {
      %c0_19 = arith.constant 0 : index
      %c0_20 = arith.constant 0 : index
      %44 = vector.load %arg3[%c0_19, %c0_20] : memref<1x1xf32, #tpu.memory_space<vmem>>, vector<1x1xf32>
      %cst_21 = arith.constant 1.250000e-01 : f32
      %45 = vector.broadcast %cst_21 : f32 to vector<1x1xf32>
      %46 = arith.mulf %44, %45 : vector<1x1xf32>
      %c0_22 = arith.constant 0 : index
      %c0_23 = arith.constant 0 : index
      %47 = vector.load %arg3[%c0_22, %c0_23] : memref<1x1xf32, #tpu.memory_space<vmem>>, vector<1x1xf32>
      tpu.vector_store %arg3[%c0_22, %c0_23], %46 {strides = array<i32>} : memref<1x1xf32, #tpu.memory_space<vmem>>, vector<1x1xf32>,
    } else {
    }
    return
  }
  func.func @transform_0(%arg0: i32) -> (i32, i32) {
    %c0_i32 = arith.constant 0 : i32
    %c0_i32_0 = arith.constant 0 : i32
    return %arg0, %c0_i32 : i32, i32
  }
  func.func @transform_1(%arg0: i32) -> (i32, i32) {
    %c0_i32 = arith.constant 0 : i32
    %c0_i32_0 = arith.constant 0 : i32
    return %arg0, %c0_i32 : i32, i32
  }
  func.func @transform_2(%arg0: i32) -> (i32, i32) {
    %c0_i32 = arith.constant 0 : i32
    %c0_i32_0 = arith.constant 0 : i32
    %c0_i32_1 = arith.constant 0 : i32
    return %c0_i32, %c0_i32_0 : i32, i32
  }
}

</mosaic_0001>

<llo_original>
// kernel: tpu_custom_call.1
$region0: #{tpu_custom_call.1}
  #allocation0 [shape = 'u32[]', space=smem, size = 0x4, offset = 0x4, fixed_abs, tag = 'smem constant byte address 0x4 - core index']
  #allocation1 [shape = 'u32[144,128]{1,0:T(1,128)}', space=vmem, size = 0x12000, scoped, tag = 'internal scratch']
  %s0 = inlined_call_operand.vmem [shape: f32[8,128], index: 0, kind: input, shape index: {}]
  %s1 = inlined_call_operand.vmem [shape: s32[8,1], index: 1, kind: input, shape index: {}]
  %s2 = inlined_call_operand.hbm [shape: f32[1,1], index: 2, kind: output, shape index: {}]
  %s3 = sld [smem:[#allocation0]]
  $region26: #{tpu_custom_call.1} parent=0
    _
  %s5 = ssub.s32 1, %s3
  %s6 = scalar_select 0, %s5, %s3
  $region1: #{tpu_custom_call.1} parent=0
    #allocation2 [shape = 'u8[512]{0}', space=vmem, size = 0x400, scoped, tag = 'output window, operand 0, single buffered']
    #allocation3 [shape = 's32[1]{0}', space=sflag, size = 0x4, scoped, tag = 'scoped memory for tpu_custom_call.1']
    %7 = vsyncpa [#allocation3], 0
    // Predicated region
    $region2: #{tpu_custom_call.1} parent=1 // pred_check
      _
    $region3: #{tpu_custom_call.1} parent=1 // pred_check_branch
      %9 = sbr.rel (0) target = $region5
    $region4: #{tpu_custom_call.1} parent=1 // pred_region
      _
    $region5: #{tpu_custom_call.1} parent=1 // pred_fallthru
      _
    // Predicated region
    $region6: #{tpu_custom_call.1} parent=1 // pred_check
      _
    $region7: #{tpu_custom_call.1} parent=1 // pred_check_branch
      %11 = sbr.rel (0) target = $region9
    $region8: #{tpu_custom_call.1} parent=1 // pred_region
      _
    $region9: #{tpu_custom_call.1} parent=1 // pred_fallthru
      _
    %p12 = scmp.eq.s32.totalorder 0, 0
    // Predicated region
    $region10: #{tpu_custom_call.1} parent=1 // pred_check
      %p13 = pneg %p12
    $region11: #{tpu_custom_call.1} parent=1 // pred_check_branch
      %15 = sbr.rel (%p13) target = $region13
    $region12: #{tpu_custom_call.1} parent=1 // pred_region
      %vm16 = vcmask 0
      %17 = vst.msk [vmem:[#allocation2] sm:$0x1] %vm16, 0.0
    $region13: #{tpu_custom_call.1} parent=1 // pred_fallthru
      _
    %v18 = vld [vmem:[%s0] sm:$0xff]
    %v19 = vld [vmem:[%s1] sm:$0xff]
    %20 = vmax.xlane.f32.xlu0 %v18
    %v21 = vpop.xlane.xlu0 %20
    %v22 = vsub.f32 %v18, %v21
    %v23 = vmul.f32 %v22, 1.442695
    %v24 = vpow.pop %v23
    %25 = vadd.xlane.f32.xlu0 %v24
    %v26 = vpop.xlane.xlu0 %25
    %v27 = vlog2.pop %v26
    %v28 = vmul.f32 %v27, 0.6931472
    %v29 = vlaneseq
    %v30 = vand.u32 %v29, 127
    %31 = vset.pattern.permute.xlu0 0
    %32 = vperm.xlu0 %31, %v19
    %v33 = vpop.permute.xlu0 %32
    %vm34 = vcmp.eq.s32.totalorder %v30, %v33
    %v35 = vsel %vm34, %v22, 0.0
    %36 = vadd.xlane.f32.xlu0 %v35
    %v37 = vpop.xlane.xlu0 %36
    %38 = vadd.xlane.f32.xlu0 %v22
    %v39 = vpop.xlane.xlu0 %38
    %v40 = vmul.f32 %v37, 0.9
    %v41 = vsub.f32 %v28, %v40
    %v42 = vmul.f32 %v39, 0.00078125
    %v43 = vsub.f32 %v41, %v42
    %v44 = vlaneseq
    %v45 = vshrl.u32 %v44, 7
    %s46 = smul.u32 0, 8
    %v47 = vstv %s46
    %v48 = vadd.s32 %v45, %v47
    %vm49 = vcmp.lt.s32.totalorder %v48, 8
    %v50 = vsel %vm49, %v43, 0.0
    %v51 = vld [vmem:[#allocation2] sm:$0x1]
    %v52 = vrot.slane %v50, 4
    %v53 = vadd.f32 %v50, %v52
    %v54 = vrot.slane %v53, 2
    %v55 = vadd.f32 %v53, %v54
    %v56 = vrot.slane %v55, 1
    %v57 = vadd.f32 %v55, %v56
    %v58 = vadd.f32 %v51, %v57
    %vm59 = vcmask 0
    %60 = vst.msk [vmem:[#allocation2] sm:$0x1] %vm59, %v58
    // Predicated region
    $region14: #{tpu_custom_call.1} parent=1 // pred_check
      %p61 = pneg %p12
    $region15: #{tpu_custom_call.1} parent=1 // pred_check_branch
      %63 = sbr.rel (%p61) target = $region17
    $region16: #{tpu_custom_call.1} parent=1 // pred_region
      %v64 = vld [vmem:[#allocation2] sm:$0x1]
      %v65 = vmul.f32 %v64, 0.125
      %66 = vst.msk [vmem:[#allocation2] sm:$0x1] %vm59, %v65
    $region17: #{tpu_custom_call.1} parent=1 // pred_fallthru
      _
    // Predicated region
    $region18: #{tpu_custom_call.1} parent=1 // pred_check
      _
    $region19: #{tpu_custom_call.1} parent=1 // pred_check_branch
      %68 = sbr.rel (0) target = $region21
    $region20: #{tpu_custom_call.1} parent=1 // pred_region
      %s70 = ssub.s32 16, 16
      %71 = vsyncadd [#allocation3], %s70
      %s73 = sshll.u32 [#allocation2], 4
      %s74 = int_to_ptr.vmem [resolvable:$true] %s73
      %76 = dma.vmem_to_hbm [thread:$0]  %s74, 16, %s2, [#allocation3]
    $region21: #{tpu_custom_call.1} parent=1 // pred_fallthru
      _
    // Predicated region
    $region22: #{tpu_custom_call.1} parent=1 // pred_check
      _
    $region23: #{tpu_custom_call.1} parent=1 // pred_check_branch
      %78 = sbr.rel (0) target = $region25
    $region24: #{tpu_custom_call.1} parent=1 // pred_region
      %79 = dma.done [#allocation3], 16
    $region25: #{tpu_custom_call.1} parent=1 // pred_fallthru
      _
    %80 = vsyncpa [#allocation3], 1

</llo_original>
